<compile_context>
chip_gen: v7x
topology: tpu7x:2x2x1
jax: 0.10.0
libtpu: 0.0.40
codegen_flags: <defaults>
</compile_context>

<pallas_src>
import jax
import jax.numpy as jnp
from jax.experimental import pallas as pl
from jax.experimental.pallas import tpu as pltpu


def _desired_chunks(nbytes: int) -> int:
    """2-4 concurrent DMAs saturate HBM for big arrays; tiny arrays need one."""
    if nbytes >= 4 * 1024 * 1024:
        return 4
    if nbytes >= 256 * 1024:
        return 2
    return 1


def _make_identity_copy_kernel(leading: int, n_chunks: int):
    """Build a kernel copying an HBM ref to an HBM ref via n_chunks async DMAs.

    Chunk boundaries are static (computed at trace time) along axis 0.
    """
    base, rem = divmod(leading, n_chunks)
    sizes = [base + (1 if k < rem else 0) for k in range(n_chunks)]
    offsets = [sum(sizes[:k]) for k in range(n_chunks)]

    def kernel(x_hbm, o_hbm, sem):
        if n_chunks == 1:
            cp = pltpu.make_async_copy(x_hbm, o_hbm, sem.at[0])
            cp.start()
            cp.wait()
            return
        copies = []
        for k in range(n_chunks):
            cp = pltpu.make_async_copy(
                x_hbm.at[pl.ds(offsets[k], sizes[k])],
                o_hbm.at[pl.ds(offsets[k], sizes[k])],
                sem.at[k],
            )
            cp.start()
            copies.append(cp)
        for cp in copies:
            cp.wait()

    return kernel


def identity_pallas(x: jax.Array) -> jax.Array:
    """Identity: returns a copy of x produced by a Pallas TPU kernel (HBM->HBM DMA)."""
    if x.size == 0:
        return x

    orig_shape = x.shape
    squeezed = x
    if x.ndim == 0:            # give the DMA a rank-1 view for a 0-d scalar
        squeezed = x.reshape(1)

    nbytes = squeezed.size * squeezed.dtype.itemsize
    n_chunks = max(1, min(_desired_chunks(nbytes), squeezed.shape[0]))

    out = pl.pallas_call(
        _make_identity_copy_kernel(squeezed.shape[0], n_chunks),
        out_shape=jax.ShapeDtypeStruct(squeezed.shape, squeezed.dtype),
        in_specs=[pl.BlockSpec(memory_space=pl.ANY)],
        out_specs=pl.BlockSpec(memory_space=pl.ANY),
        scratch_shapes=[pltpu.SemaphoreType.DMA((n_chunks,))],
        cost_estimate=pl.CostEstimate(
            flops=0, transcendentals=0, bytes_accessed=2 * nbytes),
        compiler_params=pltpu.CompilerParams(has_side_effects=True),
    )(squeezed)

    return out.reshape(orig_shape)


if __name__ == "__main__":
    key = jax.random.PRNGKey(0)
    # Small NCHW input consistent with the module's forward (any tensor works).
    x = jax.random.normal(key, (2, 4, 16, 16), dtype=jnp.float32)

    identity_fn = jax.jit(identity_pallas)
    y = jax.block_until_ready(identity_fn(x))

    assert y.shape == x.shape and y.dtype == x.dtype
    assert jnp.array_equal(y, x)
    print("KERNEL_OK")
</pallas_src>

<mosaic_0001>
module attributes {stable_mosaic.version = 11 : i64} {
  func.func @kernel(%arg0: memref<2x4x16x16xf32, #tpu.memory_space<any>>, %arg1: memref<2x4x16x16xf32, #tpu.memory_space<any>>, %arg2: memref<1x!tpu.dma_semaphore, #tpu.memory_space<semaphore_mem>>) attributes {dimension_semantics = [], scalar_prefetch = 0 : i64, scratch_operands = 1 : i64, tpu.core_type = #tpu.core_type<tc>} {
    %c0_i32 = arith.constant 0 : i32
    %0 = tpu.memref_slice %arg2[%c0_i32] : memref<1x!tpu.dma_semaphore, #tpu.memory_space<semaphore_mem>> -> memref<1x!tpu.dma_semaphore, #tpu.memory_space<semaphore_mem>>
    %1 = tpu.memref_squeeze %0 : memref<1x!tpu.dma_semaphore, #tpu.memory_space<semaphore_mem>> -> memref<!tpu.dma_semaphore, #tpu.memory_space<semaphore_mem>>
    tpu.enqueue_dma source(%arg0 : memref<2x4x16x16xf32, #tpu.memory_space<any>>) target(%arg1 : memref<2x4x16x16xf32, #tpu.memory_space<any>>) target_semaphore(%1 : memref<!tpu.dma_semaphore, #tpu.memory_space<semaphore_mem>>)
    %c0_i32_0 = arith.constant 0 : i32
    %2 = tpu.memref_slice %arg2[%c0_i32_0] : memref<1x!tpu.dma_semaphore, #tpu.memory_space<semaphore_mem>> -> memref<1x!tpu.dma_semaphore, #tpu.memory_space<semaphore_mem>>
    %3 = tpu.memref_squeeze %2 : memref<1x!tpu.dma_semaphore, #tpu.memory_space<semaphore_mem>> -> memref<!tpu.dma_semaphore, #tpu.memory_space<semaphore_mem>>
    tpu.wait_dma2 semaphore(%3 : memref<!tpu.dma_semaphore, #tpu.memory_space<semaphore_mem>>) src(%arg0 : memref<2x4x16x16xf32, #tpu.memory_space<any>>) dst(%arg1 : memref<2x4x16x16xf32, #tpu.memory_space<any>>)
    return
  }
}

</mosaic_0001>

<llo_original>
// kernel: identity_pallas.1
$region0: #{identity_pallas.1}
  #allocation0 [shape = 'u32[]', space=smem, size = 0x4, offset = 0x4, fixed_abs, tag = 'smem constant byte address 0x4 - core index']
  #allocation1 [shape = 'u32[144,128]{1,0:T(1,128)}', space=vmem, size = 0x12000, scoped, tag = 'internal scratch']
  #allocation2 [shape = 's32[1]{0}', space=sflag, size = 0x4, scoped, tag = 'scratch operand']
  #allocation3 [shape = 's32[]', space=sflag, size = 0x4, offset = 0, fixed_abs, tag = 'sflag constant byte address 0x0 - dummy sync flag']
  #allocation4 [shape = 'u32[0]{0}', space=smem, size = 0, offset = 0, fixed_abs, tag = 'smem constant byte address 0x0 - null']
  %s0 = inlined_call_operand.hbm [shape: f32[2,4,16,16], index: 0, kind: input, shape index: {}]
  %s1 = inlined_call_operand.hbm [shape: f32[2,4,16,16], index: 1, kind: output, shape index: {}]
  %s2 = sld [smem:[#allocation0]]
  $region2: #{identity_pallas.1} parent=0
    _
  %s4 = ssub.s32 1, %s2
  %s5 = scalar_select 0, %s4, %s2
  %s7 = sshll.u32 1, 14
  %s8 = sxor.u32 4294967295, %s7
  %s11 = sshll.u32 3, 24
  %s12 = sxor.u32 4294967295, %s11
  %s13 = sand.u32 0, %s12
  %s15 = sor.u32 %s13, 0
  %18 = dma.general %s0, 2048, %s1, [#allocation2], [#allocation3], [#allocation4], %s15, 0
  %s19 = smul.u32 2, 4
  %s20 = smul.u32 %s19, 16
  %s21 = smul.u32 %s20, 1
  %s22 = sshll.u32 %s21, 4
  %23 = dma.done [#allocation2], %s22
  %24 = vsyncmov [#allocation2]
  %s25 = vpop.sfrf %24
  %p26 = scmp.eq.s32.totalorder %s25, 0
  %p27 = pneg %p26
  %29 = shalt.err (%p27)

</llo_original>
